<compile_context>
chip_gen: v6e
topology: v6e:2x2x1
jax: 0.10.0
libtpu: 0.0.40
codegen_flags: <defaults>
</compile_context>

<pallas_src>
import functools

import jax
import jax.numpy as jnp
import numpy as np
from jax.experimental import pallas as pl
from jax.experimental.pallas import tpu as pltpu


def _gnavg_kernel(x_ref, w_ref, bias_ref, o_ref, *, inv_n):
    # x_ref:    VMEM [tb, tk]   graphs on sublanes, packed node features on lanes
    # w_ref:    VMEM [1, tk]    lane-major tiled Linear weight (same dtype as x)
    # bias_ref: SMEM [1]        Linear bias (resident, no per-step DMA)
    # o_ref:    VMEM [tb, 1]    per-graph f32 accumulator / output block
    k = pl.program_id(1)

    @pl.when(k == 0)
    def _():
        o_ref[...] = jnp.zeros_like(o_ref)

    # MXU matvec with f32 accumulation (rhs contracted on its last dim, i.e. a
    # trans_b matmul); bf16 inputs stay bf16 -> no full-block f32 temporary.
    part = jax.lax.dot_general(
        x_ref[...], w_ref[...],
        dimension_numbers=(((1,), (1,)), ((), ())),
        preferred_element_type=jnp.float32)                 # [tb, 1]
    o_ref[...] += part

    @pl.when(k == pl.num_programs(1) - 1)
    def _():
        o_ref[...] = o_ref[...] * inv_n + bias_ref[0]


def _round_up(x, m):
    return ((x + m - 1) // m) * m


def _vmem_capacity_bytes():
    try:
        cap = int(pltpu.get_tpu_info().vmem_capacity_bytes)
        if cap > 0:
            return cap
    except Exception:
        pass
    return 64 * 1024 * 1024   # conservative fallback: v7x per-TensorCore VMEM


def gnavg_forward(x, weight, bias, *, tb_cap=4096):
    """x: [B, N, 64], weight: [1, 64], bias: [1] -> [B, 1] float32."""
    B, N, F = x.shape
    assert F == 64, "GNAvg uses Linear(64, 1)"
    dt = x.dtype
    itemsize = jnp.dtype(dt).itemsize

    # ---- generation-aware VMEM budget ------------------------------------
    vmem_cap = _vmem_capacity_bytes()
    io_budget = min(48 * 1024 * 1024, (3 * vmem_cap) // 8)  # 2x-buffered x blocks
    blk_budget = max(io_budget // 2, 256 * 1024)             # one x block

    # ---- tile sizes --------------------------------------------------------
    n_even = N + (N % 2)              # K must be a multiple of 128 (= 2 nodes)
    k_full = n_even * F
    row_bytes = k_full * itemsize
    if 128 * row_bytes <= blk_budget:
        tk = k_full                                      # whole graph per block
        tb = max(128, (blk_budget // row_bytes) // 128 * 128)
    else:
        tb = 128                                         # huge graphs: split K
        tk = max(128, (blk_budget // (128 * itemsize)) // 128 * 128)
    tb = min(tb, tb_cap)

    b_pad = _round_up(B, 128)
    if b_pad >= 256:                  # >=2 batch blocks: megacore + DMA overlap
        tb = min(tb, _round_up(b_pad // 2, 128))
    tb = min(tb, b_pad)

    k_pad = _round_up(k_full, tk)
    n_pad = k_pad // F
    n_k = k_pad // tk
    n_b = pl.cdiv(b_pad, tb)

    # ---- wrapper-side packing (pad only when unavoidable) ------------------
    if b_pad != B or n_pad != N:
        x = jnp.pad(x, ((0, b_pad - B), (0, n_pad - N), (0, 0)))
    x2d = x.reshape(b_pad, k_pad)                         # contiguous -> free
    w_row = jnp.tile(weight.reshape(1, F), (1, n_pad)).astype(dt)   # [1, k_pad]
    bias1 = bias.reshape(1).astype(jnp.float32)                      # SMEM

    # ---- explicit VMEM limit (v5e default scoped limit is only 16 MiB) -----
    vmem_limit = int(2 * tb * tk * itemsize               # double-buffered x
                     + 2 * 16 * tk * itemsize             # w row (sublane pad)
                     + 2 * tb * 128 * 4                   # out block (lane pad)
                     + 4 * 1024 * 1024)                   # headroom
    vmem_limit = min(vmem_limit, (7 * vmem_cap) // 8)

    cost = pl.CostEstimate(
        flops=2 * B * N * F,
        transcendentals=0,
        bytes_accessed=int(x2d.size * itemsize + w_row.size * itemsize
                           + 4 + b_pad * 4),
    )

    out = pl.pallas_call(
        functools.partial(_gnavg_kernel, inv_n=1.0 / N),
        out_shape=jax.ShapeDtypeStruct((b_pad, 1), jnp.float32),
        grid_spec=pltpu.PrefetchScalarGridSpec(
            num_scalar_prefetch=0,
            grid=(n_b, n_k),
            in_specs=[
                pl.BlockSpec((tb, tk), lambda i, k: (i, k)),
                pl.BlockSpec((1, tk), lambda i, k: (0, k)),   # resident weight
                pl.BlockSpec(memory_space=pltpu.SMEM),        # resident bias
            ],
            out_specs=pl.BlockSpec((tb, 1), lambda i, k: (i, 0)),
        ),
        compiler_params=pltpu.CompilerParams(
            dimension_semantics=("parallel", "arbitrary"),
            vmem_limit_bytes=vmem_limit),
        cost_estimate=cost,
    )(x2d, w_row, bias1)

    return out[:B]


if __name__ == "__main__":
    key = jax.random.PRNGKey(0)
    k_x, k_w, k_b = jax.random.split(key, 3)

    B, N, F = 2, 8, 64  # 2 graphs, 8 nodes each, 64-d node features

    # Deterministic synthetic node features and Linear(64, 1) parameters
    # (PyTorch-style uniform(-1/sqrt(64), 1/sqrt(64)) init).
    x = jax.random.normal(k_x, (B, N, F), dtype=jnp.float32)
    bound = 1.0 / np.sqrt(F)
    weight = jax.random.uniform(k_w, (1, F), minval=-bound, maxval=bound,
                                dtype=jnp.float32)
    bias = jax.random.uniform(k_b, (1,), minval=-bound, maxval=bound,
                              dtype=jnp.float32)

    out = gnavg_forward(x, weight, bias)
    out = jax.block_until_ready(out)

    # Pure-JAX reference: mean over nodes of (x @ W^T + b)
    ref = jnp.mean(jnp.einsum("bnf,of->bno", x, weight) + bias, axis=1)
    np.testing.assert_allclose(np.asarray(out), np.asarray(ref),
                               rtol=1e-5, atol=1e-5)

    print("KERNEL_OK")
</pallas_src>

<mosaic_0001>
module attributes {stable_mosaic.version = 11 : i64} {
  func.func @_gnavg_kernel(%arg0: i32, %arg1: i32, %arg2: memref<128x512xf32, #tpu.memory_space<vmem>>, %arg3: memref<1x512xf32, #tpu.memory_space<vmem>>, %arg4: memref<1xf32, #tpu.memory_space<smem>>, %arg5: memref<128x1xf32, #tpu.memory_space<vmem>>) attributes {dimension_semantics = [#tpu.dimension_semantics<parallel>, #tpu.dimension_semantics<arbitrary>], iteration_bounds = array<i64: 1, 1>, scalar_prefetch = 0 : i64, scratch_operands = 0 : i64, tpu.core_type = #tpu.core_type<tc>, window_params = [{transform_indices = @transform_0, window_bounds = array<i64: 128, 512>}, {transform_indices = @transform_1, window_bounds = array<i64: 1, 512>}, {transform_indices = @transform_2, window_bounds = array<i64: 1>}, {transform_indices = @transform_3, window_bounds = array<i64: 128, 1>}]} {
    %c0_i32 = arith.constant 0 : i32
    %0 = arith.cmpi eq, %arg1, %c0_i32 : i32
    %1 = arith.extui %0 : i1 to i32
    %c0_i32_0 = arith.constant 0 : i32
    %2 = arith.cmpi ne, %1, %c0_i32_0 : i32
    scf.if %2 {
      %cst_10 = arith.constant 0.000000e+00 : f32
      %12 = vector.broadcast %cst_10 : f32 to vector<128x1xf32>
      %c0_11 = arith.constant 0 : index
      %c0_12 = arith.constant 0 : index
      %13 = vector.load %arg5[%c0_11, %c0_12] : memref<128x1xf32, #tpu.memory_space<vmem>>, vector<128x1xf32>
      tpu.vector_store %arg5[%c0_11, %c0_12], %12 {strides = array<i32>} : memref<128x1xf32, #tpu.memory_space<vmem>>, vector<128x1xf32>,
    } else {
    }
    %c0 = arith.constant 0 : index
    %c0_1 = arith.constant 0 : index
    %3 = vector.load %arg2[%c0, %c0_1] : memref<128x512xf32, #tpu.memory_space<vmem>>, vector<128x512xf32>
    %c0_2 = arith.constant 0 : index
    %c0_3 = arith.constant 0 : index
    %4 = vector.load %arg3[%c0_2, %c0_3] : memref<1x512xf32, #tpu.memory_space<vmem>>, vector<1x512xf32>
    %cst = arith.constant dense<0.000000e+00> : vector<128x1xf32>
    %5 = tpu.matmul %3, %4, %cst {dimension_numbers = #tpu.dot_dimension_numbers<[1], [1], [0], [0], [0, 0, 1, 0], [], []>} : vector<128x512xf32>, vector<1x512xf32>, vector<128x1xf32> -> vector<128x1xf32>
    %c0_4 = arith.constant 0 : index
    %c0_5 = arith.constant 0 : index
    %6 = vector.load %arg5[%c0_4, %c0_5] : memref<128x1xf32, #tpu.memory_space<vmem>>, vector<128x1xf32>
    %7 = arith.addf %6, %5 : vector<128x1xf32>
    %c0_6 = arith.constant 0 : index
    %c0_7 = arith.constant 0 : index
    %8 = vector.load %arg5[%c0_6, %c0_7] : memref<128x1xf32, #tpu.memory_space<vmem>>, vector<128x1xf32>
    tpu.vector_store %arg5[%c0_6, %c0_7], %7 {strides = array<i32>} : memref<128x1xf32, #tpu.memory_space<vmem>>, vector<128x1xf32>,
    %c0_i32_8 = arith.constant 0 : i32
    %9 = arith.cmpi eq, %arg1, %c0_i32_8 : i32
    %10 = arith.extui %9 : i1 to i32
    %c0_i32_9 = arith.constant 0 : i32
    %11 = arith.cmpi ne, %10, %c0_i32_9 : i32
    scf.if %11 {
      %c0_10 = arith.constant 0 : index
      %c0_11 = arith.constant 0 : index
      %12 = vector.load %arg5[%c0_10, %c0_11] : memref<128x1xf32, #tpu.memory_space<vmem>>, vector<128x1xf32>
      %cst_12 = arith.constant 1.250000e-01 : f32
      %13 = vector.broadcast %cst_12 : f32 to vector<128x1xf32>
      %14 = arith.mulf %12, %13 : vector<128x1xf32>
      %c0_13 = arith.constant 0 : index
      %15 = memref.load %arg4[%c0_13] : memref<1xf32, #tpu.memory_space<smem>>
      %16 = vector.broadcast %15 : f32 to vector<128x1xf32>
      %17 = arith.addf %14, %16 : vector<128x1xf32>
      %c0_14 = arith.constant 0 : index
      %c0_15 = arith.constant 0 : index
      %18 = vector.load %arg5[%c0_14, %c0_15] : memref<128x1xf32, #tpu.memory_space<vmem>>, vector<128x1xf32>
      tpu.vector_store %arg5[%c0_14, %c0_15], %17 {strides = array<i32>} : memref<128x1xf32, #tpu.memory_space<vmem>>, vector<128x1xf32>,
    } else {
    }
    return
  }
  func.func @transform_0(%arg0: i32, %arg1: i32) -> (i32, i32) {
    %c0_i32 = arith.constant 0 : i32
    return %arg0, %arg1 : i32, i32
  }
  func.func @transform_1(%arg0: i32, %arg1: i32) -> (i32, i32) {
    %c0_i32 = arith.constant 0 : i32
    %c0_i32_0 = arith.constant 0 : i32
    return %c0_i32, %arg1 : i32, i32
  }
  func.func @transform_2(%arg0: i32, %arg1: i32) -> i32 {
    %c0_i32 = arith.constant 0 : i32
    %c0_i32_0 = arith.constant 0 : i32
    return %c0_i32 : i32
  }
  func.func @transform_3(%arg0: i32, %arg1: i32) -> (i32, i32) {
    %c0_i32 = arith.constant 0 : i32
    %c0_i32_0 = arith.constant 0 : i32
    return %arg0, %c0_i32 : i32, i32
  }
}

</mosaic_0001>

<llo_original>
// kernel: tpu_custom_call.1
$region0: #{tpu_custom_call.1}
  #allocation0 [shape = 'u32[]', space=smem, size = 0x4, offset = 0x4, fixed_abs, tag = 'smem constant byte address 0x4 - core index']
  #allocation1 [shape = 'u32[144,128]{1,0:T(1,128)}', space=vmem, size = 0x12000, scoped, tag = 'internal scratch']
  #allocation2 [shape = 'f32[1]{0:T(128)S(6)}', space=smem, size = 0x200, scoped, tag = 'scoped memory for tpu_custom_call.1']
  %s0 = inlined_call_operand.hbm [shape: f32[128,512], index: 0, kind: input, shape index: {}]
  %s1 = inlined_call_operand.hbm [shape: f32[1,512], index: 1, kind: input, shape index: {}]
  %s2 = inlined_call_operand.<no memory space> [shape: f32[1], index: 2, kind: input, shape index: {}]
  %s3 = inlined_call_operand.vmem [shape: f32[128,1], index: 3, kind: output, shape index: {}]
  %s4 = sld [smem:[#allocation0]]
  $region38: #{tpu_custom_call.1} parent=0
    _
  %s6 = ssub.s32 1, %s4
  %s7 = scalar_select 0, %s6, %s4
  %8 = sst [smem:[#allocation2]] %s2
  $region1: #{tpu_custom_call.1} parent=0
    #allocation3 [shape = 'u8[262144]{0}', space=vmem, size = 0x40000, scoped, tag = 'input window, operand 0, single buffered']
    #allocation4 [shape = 's32[1]{0}', space=sflag, size = 0x4, scoped, tag = 'scoped memory for tpu_custom_call.1']
    #allocation5 [shape = 'u8[2048]{0}', space=vmem, size = 0x800, scoped, tag = 'input window, operand 1, single buffered']
    #allocation6 [shape = 's32[1]{0}', space=sflag, size = 0x4, scoped, tag = 'scoped memory for tpu_custom_call.1']
    %9 = vsyncpa [#allocation4], 0
    %10 = vsyncpa [#allocation6], 0
    // Predicated region
    $region2: #{tpu_custom_call.1} parent=1 // pred_check
      _
    $region3: #{tpu_custom_call.1} parent=1 // pred_check_branch
      %12 = sbr.rel (0) target = $region5
    $region4: #{tpu_custom_call.1} parent=1 // pred_region
      %s14 = ssub.s32 8192, 8192
      %15 = vsyncadd [#allocation4], %s14
      %s16 = sshll.u32 [#allocation3], 4
      %s17 = int_to_ptr.vmem [resolvable:$true] %s16
      %22 = dma.hbm_to_vmem [thread:$0]  %s0, 8192, %s17, [#allocation4], 512, 512, 32
    $region5: #{tpu_custom_call.1} parent=1 // pred_fallthru
      _
    // Predicated region
    $region6: #{tpu_custom_call.1} parent=1 // pred_check
      _
    $region7: #{tpu_custom_call.1} parent=1 // pred_check_branch
      %24 = sbr.rel (0) target = $region9
    $region8: #{tpu_custom_call.1} parent=1 // pred_region
      %s26 = ssub.s32 64, 64
      %27 = vsyncadd [#allocation6], %s26
      %s29 = sshll.u32 [#allocation5], 4
      %s30 = int_to_ptr.vmem [resolvable:$true] %s29
      %32 = dma.hbm_to_vmem [thread:$0]  %s1, 64, %s30, [#allocation6]
    $region9: #{tpu_custom_call.1} parent=1 // pred_fallthru
      _
    // Predicated region
    $region10: #{tpu_custom_call.1} parent=1 // pred_check
      _
    $region11: #{tpu_custom_call.1} parent=1 // pred_check_branch
      %34 = sbr.rel (0) target = $region13
    $region12: #{tpu_custom_call.1} parent=1 // pred_region
      _
    $region13: #{tpu_custom_call.1} parent=1 // pred_fallthru
      _
    // Predicated region
    $region14: #{tpu_custom_call.1} parent=1 // pred_check
      _
    $region15: #{tpu_custom_call.1} parent=1 // pred_check_branch
      %36 = sbr.rel (0) target = $region17
    $region16: #{tpu_custom_call.1} parent=1 // pred_region
      %37 = dma.done [#allocation4], 8192
    $region17: #{tpu_custom_call.1} parent=1 // pred_fallthru
      _
    // Predicated region
    $region18: #{tpu_custom_call.1} parent=1 // pred_check
      _
    $region19: #{tpu_custom_call.1} parent=1 // pred_check_branch
      %39 = sbr.rel (0) target = $region21
    $region20: #{tpu_custom_call.1} parent=1 // pred_region
      %40 = dma.done [#allocation6], 64
    $region21: #{tpu_custom_call.1} parent=1 // pred_fallthru
      _
    %p41 = scmp.eq.s32.totalorder 0, 0
    // Predicated region
    $region22: #{tpu_custom_call.1} parent=1 // pred_check
      %p42 = pneg %p41
    $region23: #{tpu_custom_call.1} parent=1 // pred_check_branch
      %44 = sbr.rel (%p42) target = $region25
    $region24: #{tpu_custom_call.1} parent=1 // pred_region
      %vm45 = vcmask 7168
      %46 = vst.msk [vmem:[%s3] sm:$0xff] %vm45, 0.0
      %47 = vst.msk [vmem:[%s3 + $0x8] sm:$0xff] %vm45, 0.0
      %48 = vst.msk [vmem:[%s3 + $0x10] sm:$0xff] %vm45, 0.0
      %49 = vst.msk [vmem:[%s3 + $0x18] sm:$0xff] %vm45, 0.0
      %50 = vst.msk [vmem:[%s3 + $0x20] sm:$0xff] %vm45, 0.0
      %51 = vst.msk [vmem:[%s3 + $0x28] sm:$0xff] %vm45, 0.0
      %52 = vst.msk [vmem:[%s3 + $0x30] sm:$0xff] %vm45, 0.0
      %53 = vst.msk [vmem:[%s3 + $0x38] sm:$0xff] %vm45, 0.0
      %54 = vst.msk [vmem:[%s3 + $0x40] sm:$0xff] %vm45, 0.0
      %55 = vst.msk [vmem:[%s3 + $0x48] sm:$0xff] %vm45, 0.0
      %56 = vst.msk [vmem:[%s3 + $0x50] sm:$0xff] %vm45, 0.0
      %57 = vst.msk [vmem:[%s3 + $0x58] sm:$0xff] %vm45, 0.0
      %58 = vst.msk [vmem:[%s3 + $0x60] sm:$0xff] %vm45, 0.0
      %59 = vst.msk [vmem:[%s3 + $0x68] sm:$0xff] %vm45, 0.0
      %60 = vst.msk [vmem:[%s3 + $0x70] sm:$0xff] %vm45, 0.0
      %61 = vst.msk [vmem:[%s3 + $0x78] sm:$0xff] %vm45, 0.0
    $region25: #{tpu_custom_call.1} parent=1 // pred_fallthru
      _
    %v62 = vld [vmem:[#allocation3] sm:$0xff]
    %v63 = vld [vmem:[#allocation3 + $0x8] sm:$0xff]
    %v64 = vld [vmem:[#allocation3 + $0x10] sm:$0xff]
    %v65 = vld [vmem:[#allocation3 + $0x18] sm:$0xff]
    %v66 = vld [vmem:[#allocation3 + $0x20] sm:$0xff]
    %v67 = vld [vmem:[#allocation3 + $0x28] sm:$0xff]
    %v68 = vld [vmem:[#allocation3 + $0x30] sm:$0xff]
    %v69 = vld [vmem:[#allocation3 + $0x38] sm:$0xff]
    %v70 = vld [vmem:[#allocation3 + $0x40] sm:$0xff]
    %v71 = vld [vmem:[#allocation3 + $0x48] sm:$0xff]
    %v72 = vld [vmem:[#allocation3 + $0x50] sm:$0xff]
    %v73 = vld [vmem:[#allocation3 + $0x58] sm:$0xff]
    %v74 = vld [vmem:[#allocation3 + $0x60] sm:$0xff]
    %v75 = vld [vmem:[#allocation3 + $0x68] sm:$0xff]
    %v76 = vld [vmem:[#allocation3 + $0x70] sm:$0xff]
    %v77 = vld [vmem:[#allocation3 + $0x78] sm:$0xff]
    %v78 = vld [vmem:[#allocation3 + $0x80] sm:$0xff]
    %v79 = vld [vmem:[#allocation3 + $0x88] sm:$0xff]
    %v80 = vld [vmem:[#allocation3 + $0x90] sm:$0xff]
    %v81 = vld [vmem:[#allocation3 + $0x98] sm:$0xff]
    %v82 = vld [vmem:[#allocation3 + $0xa0] sm:$0xff]
    %v83 = vld [vmem:[#allocation3 + $0xa8] sm:$0xff]
    %v84 = vld [vmem:[#allocation3 + $0xb0] sm:$0xff]
    %v85 = vld [vmem:[#allocation3 + $0xb8] sm:$0xff]
    %v86 = vld [vmem:[#allocation3 + $0xc0] sm:$0xff]
    %v87 = vld [vmem:[#allocation3 + $0xc8] sm:$0xff]
    %v88 = vld [vmem:[#allocation3 + $0xd0] sm:$0xff]
    %v89 = vld [vmem:[#allocation3 + $0xd8] sm:$0xff]
    %v90 = vld [vmem:[#allocation3 + $0xe0] sm:$0xff]
    %v91 = vld [vmem:[#allocation3 + $0xe8] sm:$0xff]
    %v92 = vld [vmem:[#allocation3 + $0xf0] sm:$0xff]
    %v93 = vld [vmem:[#allocation3 + $0xf8] sm:$0xff]
    %v94 = vld [vmem:[#allocation3 + $0x100] sm:$0xff]
    %v95 = vld [vmem:[#allocation3 + $0x108] sm:$0xff]
    %v96 = vld [vmem:[#allocation3 + $0x110] sm:$0xff]
    %v97 = vld [vmem:[#allocation3 + $0x118] sm:$0xff]
    %v98 = vld [vmem:[#allocation3 + $0x120] sm:$0xff]
    %v99 = vld [vmem:[#allocation3 + $0x128] sm:$0xff]
    %v100 = vld [vmem:[#allocation3 + $0x130] sm:$0xff]
    %v101 = vld [vmem:[#allocation3 + $0x138] sm:$0xff]
    %v102 = vld [vmem:[#allocation3 + $0x140] sm:$0xff]
    %v103 = vld [vmem:[#allocation3 + $0x148] sm:$0xff]
    %v104 = vld [vmem:[#allocation3 + $0x150] sm:$0xff]
    %v105 = vld [vmem:[#allocation3 + $0x158] sm:$0xff]
    %v106 = vld [vmem:[#allocation3 + $0x160] sm:$0xff]
    %v107 = vld [vmem:[#allocation3 + $0x168] sm:$0xff]
    %v108 = vld [vmem:[#allocation3 + $0x170] sm:$0xff]
    %v109 = vld [vmem:[#allocation3 + $0x178] sm:$0xff]
    %v110 = vld [vmem:[#allocation3 + $0x180] sm:$0xff]
    %v111 = vld [vmem:[#allocation3 + $0x188] sm:$0xff]
    %v112 = vld [vmem:[#allocation3 + $0x190] sm:$0xff]
    %v113 = vld [vmem:[#allocation3 + $0x198] sm:$0xff]
    %v114 = vld [vmem:[#allocation3 + $0x1a0] sm:$0xff]
    %v115 = vld [vmem:[#allocation3 + $0x1a8] sm:$0xff]
    %v116 = vld [vmem:[#allocation3 + $0x1b0] sm:$0xff]
    %v117 = vld [vmem:[#allocation3 + $0x1b8] sm:$0xff]
    %v118 = vld [vmem:[#allocation3 + $0x1c0] sm:$0xff]
    %v119 = vld [vmem:[#allocation3 + $0x1c8] sm:$0xff]
    %v120 = vld [vmem:[#allocation3 + $0x1d0] sm:$0xff]
    %v121 = vld [vmem:[#allocation3 + $0x1d8] sm:$0xff]
    %v122 = vld [vmem:[#allocation3 + $0x1e0] sm:$0xff]
    %v123 = vld [vmem:[#allocation3 + $0x1e8] sm:$0xff]
    %v124 = vld [vmem:[#allocation3 + $0x1f0] sm:$0xff]
    %v125 = vld [vmem:[#allocation3 + $0x1f8] sm:$0xff]
    %v126 = vld [vmem:[#allocation5] sm:$0xf]
    %v128 = vlaneseq
    %v129 = vshrl.u32 %v128, 7
    %v130 = vsub.s32 0, %v129
    %v131 = vrot.slane %v126, %v130
    %v132 = vlaneseq
    %v133 = vshrl.u32 %v132, 7
    %v134 = vsub.s32 1, %v133
    %v135 = vrot.slane %v126, %v134
    %v136 = vlaneseq
    %v137 = vshrl.u32 %v136, 7
    %v138 = vsub.s32 2, %v137
    %v139 = vrot.slane %v126, %v138
    %v140 = vlaneseq
    %v141 = vshrl.u32 %v140, 7
    %v142 = vsub.s32 3, %v141
    %v143 = vrot.slane %v126, %v142
    %v148 = vmul.f32 %v62, %v131
    %v149 = vmul.f32 %v63, %v135
    %v150 = vmul.f32 %v64, %v139
    %v151 = vmul.f32 %v65, %v143
    %v152 = vmul.f32 %v66, %v131
    %v153 = vmul.f32 %v67, %v135
    %v154 = vmul.f32 %v68, %v139
    %v155 = vmul.f32 %v69, %v143
    %v156 = vmul.f32 %v70, %v131
    %v157 = vmul.f32 %v71, %v135
    %v158 = vmul.f32 %v72, %v139
    %v159 = vmul.f32 %v73, %v143
    %v160 = vmul.f32 %v74, %v131
    %v161 = vmul.f32 %v75, %v135
    %v162 = vmul.f32 %v76, %v139
    %v163 = vmul.f32 %v77, %v143
    %v164 = vmul.f32 %v78, %v131
    %v165 = vmul.f32 %v79, %v135
    %v166 = vmul.f32 %v80, %v139
    %v167 = vmul.f32 %v81, %v143
    %v168 = vmul.f32 %v82, %v131
    %v169 = vmul.f32 %v83, %v135
    %v170 = vmul.f32 %v84, %v139
    %v171 = vmul.f32 %v85, %v143
    %v172 = vmul.f32 %v86, %v131
    %v173 = vmul.f32 %v87, %v135
    %v174 = vmul.f32 %v88, %v139
    %v175 = vmul.f32 %v89, %v143
    %v176 = vmul.f32 %v90, %v131
    %v177 = vmul.f32 %v91, %v135
    %v178 = vmul.f32 %v92, %v139
    %v179 = vmul.f32 %v93, %v143
    %v180 = vmul.f32 %v94, %v131
    %v181 = vmul.f32 %v95, %v135
    %v182 = vmul.f32 %v96, %v139
    %v183 = vmul.f32 %v97, %v143
    %v184 = vmul.f32 %v98, %v131
    %v185 = vmul.f32 %v99, %v135
    %v186 = vmul.f32 %v100, %v139
    %v187 = vmul.f32 %v101, %v143
    %v188 = vmul.f32 %v102, %v131
    %v189 = vmul.f32 %v103, %v135
    %v190 = vmul.f32 %v104, %v139
    %v191 = vmul.f32 %v105, %v143
    %v192 = vmul.f32 %v106, %v131
    %v193 = vmul.f32 %v107, %v135
    %v194 = vmul.f32 %v108, %v139
    %v195 = vmul.f32 %v109, %v143
    %v196 = vmul.f32 %v110, %v131
    %v197 = vmul.f32 %v111, %v135
    %v198 = vmul.f32 %v112, %v139
    %v199 = vmul.f32 %v113, %v143
    %v200 = vmul.f32 %v114, %v131
    %v201 = vmul.f32 %v115, %v135
    %v202 = vmul.f32 %v116, %v139
    %v203 = vmul.f32 %v117, %v143
    %v204 = vmul.f32 %v118, %v131
    %v205 = vmul.f32 %v119, %v135
    %v206 = vmul.f32 %v120, %v139
    %v207 = vmul.f32 %v121, %v143
    %v208 = vmul.f32 %v122, %v131
    %v209 = vmul.f32 %v123, %v135
    %v210 = vmul.f32 %v124, %v139
    %v211 = vmul.f32 %v125, %v143
    %v212 = vadd.f32 %v148, %v149
    %v213 = vadd.f32 %v212, %v150
    %v214 = vadd.f32 %v213, %v151
    %215 = vadd.xlane.f32.xlu0 %v214
    %v216 = vpop.xlane.xlu0 %215
    %v217 = vadd.f32 %v152, %v153
    %v218 = vadd.f32 %v217, %v154
    %v219 = vadd.f32 %v218, %v155
    %220 = vadd.xlane.f32.xlu0 %v219
    %v221 = vpop.xlane.xlu0 %220
    %v222 = vadd.f32 %v156, %v157
    %v223 = vadd.f32 %v222, %v158
    %v224 = vadd.f32 %v223, %v159
    %225 = vadd.xlane.f32.xlu0 %v224
    %v226 = vpop.xlane.xlu0 %225
    %v227 = vadd.f32 %v160, %v161
    %v228 = vadd.f32 %v227, %v162
    %v229 = vadd.f32 %v228, %v163
    %230 = vadd.xlane.f32.xlu0 %v229
    %v231 = vpop.xlane.xlu0 %230
    %v232 = vadd.f32 %v164, %v165
    %v233 = vadd.f32 %v232, %v166
    %v234 = vadd.f32 %v233, %v167
    %235 = vadd.xlane.f32.xlu0 %v234
    %v236 = vpop.xlane.xlu0 %235
    %v237 = vadd.f32 %v168, %v169
    %v238 = vadd.f32 %v237, %v170
    %v239 = vadd.f32 %v238, %v171
    %240 = vadd.xlane.f32.xlu0 %v239
    %v241 = vpop.xlane.xlu0 %240
    %v242 = vadd.f32 %v172, %v173
    %v243 = vadd.f32 %v242, %v174
    %v244 = vadd.f32 %v243, %v175
    %245 = vadd.xlane.f32.xlu0 %v244
    %v246 = vpop.xlane.xlu0 %245
    %v247 = vadd.f32 %v176, %v177
    %v248 = vadd.f32 %v247, %v178
    %v249 = vadd.f32 %v248, %v179
    %250 = vadd.xlane.f32.xlu0 %v249
    %v251 = vpop.xlane.xlu0 %250
    %v252 = vadd.f32 %v180, %v181
    %v253 = vadd.f32 %v252, %v182
    %v254 = vadd.f32 %v253, %v183
    %255 = vadd.xlane.f32.xlu0 %v254
    %v256 = vpop.xlane.xlu0 %255
    %v257 = vadd.f32 %v184, %v185
    %v258 = vadd.f32 %v257, %v186
    %v259 = vadd.f32 %v258, %v187
    %260 = vadd.xlane.f32.xlu0 %v259
    %v261 = vpop.xlane.xlu0 %260
    %v262 = vadd.f32 %v188, %v189
    %v263 = vadd.f32 %v262, %v190
    %v264 = vadd.f32 %v263, %v191
    %265 = vadd.xlane.f32.xlu0 %v264
    %v266 = vpop.xlane.xlu0 %265
    %v267 = vadd.f32 %v192, %v193
    %v268 = vadd.f32 %v267, %v194
    %v269 = vadd.f32 %v268, %v195
    %270 = vadd.xlane.f32.xlu0 %v269
    %v271 = vpop.xlane.xlu0 %270
    %v272 = vadd.f32 %v196, %v197
    %v273 = vadd.f32 %v272, %v198
    %v274 = vadd.f32 %v273, %v199
    %275 = vadd.xlane.f32.xlu0 %v274
    %v276 = vpop.xlane.xlu0 %275
    %v277 = vadd.f32 %v200, %v201
    %v278 = vadd.f32 %v277, %v202
    %v279 = vadd.f32 %v278, %v203
    %280 = vadd.xlane.f32.xlu0 %v279
    %v281 = vpop.xlane.xlu0 %280
    %v282 = vadd.f32 %v204, %v205
    %v283 = vadd.f32 %v282, %v206
    %v284 = vadd.f32 %v283, %v207
    %285 = vadd.xlane.f32.xlu0 %v284
    %v286 = vpop.xlane.xlu0 %285
    %v287 = vadd.f32 %v208, %v209
    %v288 = vadd.f32 %v287, %v210
    %v289 = vadd.f32 %v288, %v211
    %290 = vadd.xlane.f32.xlu0 %v289
    %v291 = vpop.xlane.xlu0 %290
    %v292 = vld [vmem:[%s3] sm:$0xff]
    %v293 = vld [vmem:[%s3 + $0x8] sm:$0xff]
    %v294 = vld [vmem:[%s3 + $0x10] sm:$0xff]
    %v295 = vld [vmem:[%s3 + $0x18] sm:$0xff]
    %v296 = vld [vmem:[%s3 + $0x20] sm:$0xff]
    %v297 = vld [vmem:[%s3 + $0x28] sm:$0xff]
    %v298 = vld [vmem:[%s3 + $0x30] sm:$0xff]
    %v299 = vld [vmem:[%s3 + $0x38] sm:$0xff]
    %v300 = vld [vmem:[%s3 + $0x40] sm:$0xff]
    %v301 = vld [vmem:[%s3 + $0x48] sm:$0xff]
    %v302 = vld [vmem:[%s3 + $0x50] sm:$0xff]
    %v303 = vld [vmem:[%s3 + $0x58] sm:$0xff]
    %v304 = vld [vmem:[%s3 + $0x60] sm:$0xff]
    %v305 = vld [vmem:[%s3 + $0x68] sm:$0xff]
    %v306 = vld [vmem:[%s3 + $0x70] sm:$0xff]
    %v307 = vld [vmem:[%s3 + $0x78] sm:$0xff]
    %v308 = vadd.f32 %v292, %v216
    %v309 = vadd.f32 %v293, %v221
    %v310 = vadd.f32 %v294, %v226
    %v311 = vadd.f32 %v295, %v231
    %v312 = vadd.f32 %v296, %v236
    %v313 = vadd.f32 %v297, %v241
    %v314 = vadd.f32 %v298, %v246
    %v315 = vadd.f32 %v299, %v251
    %v316 = vadd.f32 %v300, %v256
    %v317 = vadd.f32 %v301, %v261
    %v318 = vadd.f32 %v302, %v266
    %v319 = vadd.f32 %v303, %v271
    %v320 = vadd.f32 %v304, %v276
    %v321 = vadd.f32 %v305, %v281
    %v322 = vadd.f32 %v306, %v286
    %v323 = vadd.f32 %v307, %v291
    %vm324 = vcmask 7168
    %325 = vst.msk [vmem:[%s3] sm:$0xff] %vm324, %v308
    %326 = vst.msk [vmem:[%s3 + $0x8] sm:$0xff] %vm324, %v309
    %327 = vst.msk [vmem:[%s3 + $0x10] sm:$0xff] %vm324, %v310
    %328 = vst.msk [vmem:[%s3 + $0x18] sm:$0xff] %vm324, %v311
    %329 = vst.msk [vmem:[%s3 + $0x20] sm:$0xff] %vm324, %v312
    %330 = vst.msk [vmem:[%s3 + $0x28] sm:$0xff] %vm324, %v313
    %331 = vst.msk [vmem:[%s3 + $0x30] sm:$0xff] %vm324, %v314
    %332 = vst.msk [vmem:[%s3 + $0x38] sm:$0xff] %vm324, %v315
    %333 = vst.msk [vmem:[%s3 + $0x40] sm:$0xff] %vm324, %v316
    %334 = vst.msk [vmem:[%s3 + $0x48] sm:$0xff] %vm324, %v317
    %335 = vst.msk [vmem:[%s3 + $0x50] sm:$0xff] %vm324, %v318
    %336 = vst.msk [vmem:[%s3 + $0x58] sm:$0xff] %vm324, %v319
    %337 = vst.msk [vmem:[%s3 + $0x60] sm:$0xff] %vm324, %v320
    %338 = vst.msk [vmem:[%s3 + $0x68] sm:$0xff] %vm324, %v321
    %339 = vst.msk [vmem:[%s3 + $0x70] sm:$0xff] %vm324, %v322
    %340 = vst.msk [vmem:[%s3 + $0x78] sm:$0xff] %vm324, %v323
    // Predicated region
    $region26: #{tpu_custom_call.1} parent=1 // pred_check
      %p341 = pneg %p41
    $region27: #{tpu_custom_call.1} parent=1 // pred_check_branch
      %343 = sbr.rel (%p341) target = $region29
    $region28: #{tpu_custom_call.1} parent=1 // pred_region
      %v344 = vld [vmem:[%s3] sm:$0xff]
      %v345 = vld [vmem:[%s3 + $0x8] sm:$0xff]
      %v346 = vld [vmem:[%s3 + $0x10] sm:$0xff]
      %v347 = vld [vmem:[%s3 + $0x18] sm:$0xff]
      %v348 = vld [vmem:[%s3 + $0x20] sm:$0xff]
      %v349 = vld [vmem:[%s3 + $0x28] sm:$0xff]
      %v350 = vld [vmem:[%s3 + $0x30] sm:$0xff]
      %v351 = vld [vmem:[%s3 + $0x38] sm:$0xff]
      %v352 = vld [vmem:[%s3 + $0x40] sm:$0xff]
      %v353 = vld [vmem:[%s3 + $0x48] sm:$0xff]
      %v354 = vld [vmem:[%s3 + $0x50] sm:$0xff]
      %v355 = vld [vmem:[%s3 + $0x58] sm:$0xff]
      %v356 = vld [vmem:[%s3 + $0x60] sm:$0xff]
      %v357 = vld [vmem:[%s3 + $0x68] sm:$0xff]
      %v358 = vld [vmem:[%s3 + $0x70] sm:$0xff]
      %v359 = vld [vmem:[%s3 + $0x78] sm:$0xff]
      %v360 = vmul.f32 %v344, 0.125
      %v361 = vmul.f32 %v345, 0.125
      %v362 = vmul.f32 %v346, 0.125
      %v363 = vmul.f32 %v347, 0.125
      %v364 = vmul.f32 %v348, 0.125
      %v365 = vmul.f32 %v349, 0.125
      %v366 = vmul.f32 %v350, 0.125
      %v367 = vmul.f32 %v351, 0.125
      %v368 = vmul.f32 %v352, 0.125
      %v369 = vmul.f32 %v353, 0.125
      %v370 = vmul.f32 %v354, 0.125
      %v371 = vmul.f32 %v355, 0.125
      %v372 = vmul.f32 %v356, 0.125
      %v373 = vmul.f32 %v357, 0.125
      %v374 = vmul.f32 %v358, 0.125
      %v375 = vmul.f32 %v359, 0.125
      %s376 = sld [smem:[#allocation2]]
      %v377 = vstv %s376
      %v378 = vadd.f32 %v360, %v377
      %v379 = vadd.f32 %v361, %v377
      %v380 = vadd.f32 %v362, %v377
      %v381 = vadd.f32 %v363, %v377
      %v382 = vadd.f32 %v364, %v377
      %v383 = vadd.f32 %v365, %v377
      %v384 = vadd.f32 %v366, %v377
      %v385 = vadd.f32 %v367, %v377
      %v386 = vadd.f32 %v368, %v377
      %v387 = vadd.f32 %v369, %v377
      %v388 = vadd.f32 %v370, %v377
      %v389 = vadd.f32 %v371, %v377
      %v390 = vadd.f32 %v372, %v377
      %v391 = vadd.f32 %v373, %v377
      %v392 = vadd.f32 %v374, %v377
      %v393 = vadd.f32 %v375, %v377
      %394 = vst.msk [vmem:[%s3] sm:$0xff] %vm324, %v378
      %395 = vst.msk [vmem:[%s3 + $0x8] sm:$0xff] %vm324, %v379
      %396 = vst.msk [vmem:[%s3 + $0x10] sm:$0xff] %vm324, %v380
      %397 = vst.msk [vmem:[%s3 + $0x18] sm:$0xff] %vm324, %v381
      %398 = vst.msk [vmem:[%s3 + $0x20] sm:$0xff] %vm324, %v382
      %399 = vst.msk [vmem:[%s3 + $0x28] sm:$0xff] %vm324, %v383
      %400 = vst.msk [vmem:[%s3 + $0x30] sm:$0xff] %vm324, %v384
      %401 = vst.msk [vmem:[%s3 + $0x38] sm:$0xff] %vm324, %v385
      %402 = vst.msk [vmem:[%s3 + $0x40] sm:$0xff] %vm324, %v386
      %403 = vst.msk [vmem:[%s3 + $0x48] sm:$0xff] %vm324, %v387
      %404 = vst.msk [vmem:[%s3 + $0x50] sm:$0xff] %vm324, %v388
      %405 = vst.msk [vmem:[%s3 + $0x58] sm:$0xff] %vm324, %v389
      %406 = vst.msk [vmem:[%s3 + $0x60] sm:$0xff] %vm324, %v390
      %407 = vst.msk [vmem:[%s3 + $0x68] sm:$0xff] %vm324, %v391
      %408 = vst.msk [vmem:[%s3 + $0x70] sm:$0xff] %vm324, %v392
      %409 = vst.msk [vmem:[%s3 + $0x78] sm:$0xff] %vm324, %v393
    $region29: #{tpu_custom_call.1} parent=1 // pred_fallthru
      _
    // Predicated region
    $region30: #{tpu_custom_call.1} parent=1 // pred_check
      _
    $region31: #{tpu_custom_call.1} parent=1 // pred_check_branch
      %411 = sbr.rel (0) target = $region33
    $region32: #{tpu_custom_call.1} parent=1 // pred_region
      _
    $region33: #{tpu_custom_call.1} parent=1 // pred_fallthru
      _
    // Predicated region
    $region34: #{tpu_custom_call.1} parent=1 // pred_check
      _
    $region35: #{tpu_custom_call.1} parent=1 // pred_check_branch
      %413 = sbr.rel (0) target = $region37
    $region36: #{tpu_custom_call.1} parent=1 // pred_region
      _
    $region37: #{tpu_custom_call.1} parent=1 // pred_fallthru
      _
    %414 = vsyncpa [#allocation4], 1
    %415 = vsyncpa [#allocation6], 1

</llo_original>
